<compile_context>
chip_gen: v6e
topology: v6e:2x2x1
jax: 0.10.0
libtpu: 0.0.40
codegen_flags: <defaults>
</compile_context>

<pallas_src>
import functools

import jax
import jax.numpy as jnp
from jax import lax
from jax.experimental import pallas as pl
from jax.experimental.pallas import tpu as pltpu

_TR_MAX = 512   # rows per input tile (multiple of 8)
_TC_MAX = 2048  # lanes per input tile (multiple of 128)


def _round_up(x: int, m: int) -> int:
    return ((x + m - 1) // m) * m


def _reduce_sum_axis0_kernel(x_ref, o_ref, acc_ref, *, num_rows, block_rows):
    # x_ref: (TR, TC) input tile; o_ref: (1, TC) output tile (resident across the R axis);
    # acc_ref: (8, TC) f32 scratch accumulator.
    k = pl.program_id(1)

    @pl.when(k == 0)
    def _init():
        acc_ref[...] = jnp.zeros_like(acc_ref)

    x = x_ref[...].astype(jnp.float32)
    tr, tc = x.shape

    if num_rows % block_rows != 0:
        # Statically-ragged row extent: rows past the true extent of the final block hold
        # unspecified data, so zero them before accumulating (cheap (TR,1) mask broadcast;
        # VPU has ample slack in this HBM-bound kernel).
        row = k * block_rows + lax.broadcasted_iota(jnp.int32, (tr, 1), 0)
        x = jnp.where(row < num_rows, x, 0.0)

    # Fold TR rows onto 8 sublanes with pure VPU adds (no per-step XLU reduce).
    acc_ref[...] += x.reshape(tr // 8, 8, tc).sum(axis=0)

    @pl.when(k == pl.num_programs(1) - 1)
    def _finalize():
        # One cross-sublane (XLU) reduce per output block; lane-dense (multiple-of-128) store.
        o_ref[...] = jnp.sum(acc_ref[...], axis=0, keepdims=True).astype(o_ref.dtype)


def reduce_sum_axis0(x: jax.Array) -> jax.Array:
    """Pallas equivalent of torch.sum(x, 0) for a rank-2 float32 input."""
    R, C = x.shape
    TR = min(_round_up(R, 8), _TR_MAX)      # block rows, multiple of 8
    TC = min(_round_up(C, 128), _TC_MAX)    # block lanes, multiple of 128

    grid = (pl.cdiv(C, TC), pl.cdiv(R, TR))  # (parallel C blocks, reduction R blocks last)

    kernel = functools.partial(_reduce_sum_axis0_kernel, num_rows=R, block_rows=TR)

    out2d = pl.pallas_call(
        kernel,
        out_shape=jax.ShapeDtypeStruct((1, C), x.dtype),
        grid=grid,
        in_specs=[pl.BlockSpec((TR, TC), lambda j, k: (k, j))],
        out_specs=pl.BlockSpec((1, TC), lambda j, k: (0, j)),
        scratch_shapes=[pltpu.VMEM((8, TC), jnp.float32)],
        compiler_params=pltpu.CompilerParams(
            dimension_semantics=("parallel", "arbitrary"),
        ),
    )(x)

    # torch.sum(input, 0) does not keep dims -> rank-1 [C].
    return out2d[0]


if __name__ == "__main__":
    key = jax.random.PRNGKey(0)

    # Small shapes consistent with ReduceSum_F32_R2_d0 (rank-2 f32 input, reduce dim 0),
    # plus ragged / multi-tile shapes to exercise the edge-block masking and the tiled grid.
    shapes = [(8, 128), (1000, 300), (1040, 2176)]

    for i, shape in enumerate(shapes):
        k = jax.random.fold_in(key, i)
        x = jax.random.normal(k, shape, dtype=jnp.float32)

        out = jax.block_until_ready(reduce_sum_axis0(x))
        ref = jnp.sum(x, axis=0)

        assert out.shape == ref.shape == (shape[1],), (out.shape, ref.shape)
        assert jnp.allclose(out, ref, atol=3e-3, rtol=1e-4), (
            f"mismatch for shape {shape}: max abs err "
            f"{jnp.max(jnp.abs(out - ref))}"
        )

    print("KERNEL_OK")
</pallas_src>

<mosaic_0001>
module attributes {stable_mosaic.version = 11 : i64} {
  func.func @_reduce_sum_axis0_kernel(%arg0: i32, %arg1: i32, %arg2: memref<8x128xf32, #tpu.memory_space<vmem>>, %arg3: memref<1x128xf32, #tpu.memory_space<vmem>>, %arg4: memref<8x128xf32, #tpu.memory_space<vmem>>) attributes {dimension_semantics = [#tpu.dimension_semantics<parallel>, #tpu.dimension_semantics<arbitrary>], iteration_bounds = array<i64: 1, 1>, scalar_prefetch = 0 : i64, scratch_operands = 1 : i64, tpu.core_type = #tpu.core_type<tc>, window_params = [{transform_indices = @transform_0, window_bounds = array<i64: 8, 128>}, {transform_indices = @transform_1, window_bounds = array<i64: 1, 128>}]} {
    %c0_i32 = arith.constant 0 : i32
    %0 = arith.cmpi eq, %arg1, %c0_i32 : i32
    %1 = arith.extui %0 : i1 to i32
    %c0_i32_0 = arith.constant 0 : i32
    %2 = arith.cmpi ne, %1, %c0_i32_0 : i32
    scf.if %2 {
      %cst_8 = arith.constant 0.000000e+00 : f32
      %12 = vector.broadcast %cst_8 : f32 to vector<8x128xf32>
      %c0_9 = arith.constant 0 : index
      %c0_10 = arith.constant 0 : index
      %13 = vector.load %arg4[%c0_9, %c0_10] : memref<8x128xf32, #tpu.memory_space<vmem>>, vector<8x128xf32>
      tpu.vector_store %arg4[%c0_9, %c0_10], %12 {strides = array<i32>} : memref<8x128xf32, #tpu.memory_space<vmem>>, vector<8x128xf32>,
    } else {
    }
    %c0 = arith.constant 0 : index
    %c0_1 = arith.constant 0 : index
    %3 = vector.load %arg2[%c0, %c0_1] : memref<8x128xf32, #tpu.memory_space<vmem>>, vector<8x128xf32>
    %c0_2 = arith.constant 0 : index
    %c0_3 = arith.constant 0 : index
    %4 = vector.load %arg4[%c0_2, %c0_3] : memref<8x128xf32, #tpu.memory_space<vmem>>, vector<8x128xf32>
    %5 = vector.shape_cast %3 : vector<8x128xf32> to vector<1x8x128xf32>
    %cst = arith.constant dense<0.000000e+00> : vector<8x128xf32>
    %6 = vector.multi_reduction <add>, %5, %cst [0] : vector<1x8x128xf32> to vector<8x128xf32>
    %7 = arith.addf %4, %6 : vector<8x128xf32>
    %c0_4 = arith.constant 0 : index
    %c0_5 = arith.constant 0 : index
    %8 = vector.load %arg4[%c0_4, %c0_5] : memref<8x128xf32, #tpu.memory_space<vmem>>, vector<8x128xf32>
    tpu.vector_store %arg4[%c0_4, %c0_5], %7 {strides = array<i32>} : memref<8x128xf32, #tpu.memory_space<vmem>>, vector<8x128xf32>,
    %c0_i32_6 = arith.constant 0 : i32
    %9 = arith.cmpi eq, %arg1, %c0_i32_6 : i32
    %10 = arith.extui %9 : i1 to i32
    %c0_i32_7 = arith.constant 0 : i32
    %11 = arith.cmpi ne, %10, %c0_i32_7 : i32
    scf.if %11 {
      %c0_8 = arith.constant 0 : index
      %c0_9 = arith.constant 0 : index
      %12 = vector.load %arg4[%c0_8, %c0_9] : memref<8x128xf32, #tpu.memory_space<vmem>>, vector<8x128xf32>
      %cst_10 = arith.constant dense<0.000000e+00> : vector<128xf32>
      %13 = vector.multi_reduction <add>, %12, %cst_10 [0] : vector<8x128xf32> to vector<128xf32>
      %14 = vector.shape_cast %13 : vector<128xf32> to vector<1x128xf32>
      %c0_11 = arith.constant 0 : index
      %c0_12 = arith.constant 0 : index
      %15 = vector.load %arg3[%c0_11, %c0_12] : memref<1x128xf32, #tpu.memory_space<vmem>>, vector<1x128xf32>
      tpu.vector_store %arg3[%c0_11, %c0_12], %14 {strides = array<i32>} : memref<1x128xf32, #tpu.memory_space<vmem>>, vector<1x128xf32>,
    } else {
    }
    return
  }
  func.func @transform_0(%arg0: i32, %arg1: i32) -> (i32, i32) {
    %c0_i32 = arith.constant 0 : i32
    return %arg1, %arg0 : i32, i32
  }
  func.func @transform_1(%arg0: i32, %arg1: i32) -> (i32, i32) {
    %c0_i32 = arith.constant 0 : i32
    %c0_i32_0 = arith.constant 0 : i32
    return %c0_i32, %arg0 : i32, i32
  }
}

</mosaic_0001>

<llo_original>
// kernel: tpu_custom_call.1
$region0: #{tpu_custom_call.1}
  #allocation0 [shape = 'u32[]', space=smem, size = 0x4, offset = 0x4, fixed_abs, tag = 'smem constant byte address 0x4 - core index']
  #allocation1 [shape = 'u32[144,128]{1,0:T(1,128)}', space=vmem, size = 0x12000, scoped, tag = 'internal scratch']
  #allocation2 [shape = 'f32[8,128]{1,0:T(8,128)}', space=vmem, size = 0x1000, scoped, tag = 'scratch operand']
  %s0 = inlined_call_operand.hbm [shape: f32[8,128], index: 0, kind: input, shape index: {}]
  %s1 = inlined_call_operand.hbm [shape: f32[1,128], index: 1, kind: output, shape index: {}]
  %s2 = sld [smem:[#allocation0]]
  $region26: #{tpu_custom_call.1} parent=0
    _
  %s4 = ssub.s32 1, %s2
  %s5 = scalar_select 0, %s4, %s2
  $region1: #{tpu_custom_call.1} parent=0
    #allocation3 [shape = 'u8[4096]{0}', space=vmem, size = 0x1000, scoped, tag = 'input window, operand 0, single buffered']
    #allocation4 [shape = 's32[1]{0}', space=sflag, size = 0x4, scoped, tag = 'scoped memory for tpu_custom_call.1']
    #allocation5 [shape = 's32[1]{0}', space=sflag, size = 0x4, scoped, tag = 'scoped memory for tpu_custom_call.1']
    #allocation6 [shape = 'u8[512]{0}', space=vmem, size = 0x400, scoped, tag = 'output window, operand 0, single buffered']
    %6 = vsyncpa [#allocation4], 0
    %7 = vsyncpa [#allocation5], 0
    // Predicated region
    $region2: #{tpu_custom_call.1} parent=1 // pred_check
      _
    $region3: #{tpu_custom_call.1} parent=1 // pred_check_branch
      %9 = sbr.rel (0) target = $region5
    $region4: #{tpu_custom_call.1} parent=1 // pred_region
      %s11 = ssub.s32 128, 128
      %12 = vsyncadd [#allocation4], %s11
      %s14 = sshll.u32 [#allocation3], 4
      %s15 = int_to_ptr.vmem [resolvable:$true] %s14
      %17 = dma.hbm_to_vmem [thread:$0]  %s0, 128, %s15, [#allocation4]
    $region5: #{tpu_custom_call.1} parent=1 // pred_fallthru
      _
    // Predicated region
    $region6: #{tpu_custom_call.1} parent=1 // pred_check
      _
    $region7: #{tpu_custom_call.1} parent=1 // pred_check_branch
      %19 = sbr.rel (0) target = $region9
    $region8: #{tpu_custom_call.1} parent=1 // pred_region
      %20 = dma.done [#allocation4], 128
    $region9: #{tpu_custom_call.1} parent=1 // pred_fallthru
      _
    %p21 = scmp.eq.s32.totalorder 0, 0
    // Predicated region
    $region10: #{tpu_custom_call.1} parent=1 // pred_check
      %p22 = pneg %p21
    $region11: #{tpu_custom_call.1} parent=1 // pred_check_branch
      %24 = sbr.rel (%p22) target = $region13
    $region12: #{tpu_custom_call.1} parent=1 // pred_region
      %25 = vst [vmem:[#allocation2] sm:$0xff] 0.0
    $region13: #{tpu_custom_call.1} parent=1 // pred_fallthru
      _
    %v26 = vld [vmem:[#allocation3] sm:$0xff]
    %v27 = vld [vmem:[#allocation2] sm:$0xff]
    %v28 = vadd.f32 %v26, 0.0
    %v29 = vadd.f32 %v27, %v28
    %30 = vst [vmem:[#allocation2] sm:$0xff] %v29
    // Predicated region
    $region14: #{tpu_custom_call.1} parent=1 // pred_check
      %p31 = pneg %p21
    $region15: #{tpu_custom_call.1} parent=1 // pred_check_branch
      %33 = sbr.rel (%p31) target = $region17
    $region16: #{tpu_custom_call.1} parent=1 // pred_region
      %v34 = vld [vmem:[#allocation2] sm:$0xff]
      %v35 = vrot.slane %v34, 4
      %v36 = vadd.f32 %v34, %v35
      %v37 = vrot.slane %v36, 2
      %v38 = vadd.f32 %v36, %v37
      %v39 = vrot.slane %v38, 1
      %v40 = vadd.f32 %v38, %v39
      %41 = vst [vmem:[#allocation6] sm:$0x1] %v40
    $region17: #{tpu_custom_call.1} parent=1 // pred_fallthru
      _
    // Predicated region
    $region18: #{tpu_custom_call.1} parent=1 // pred_check
      _
    $region19: #{tpu_custom_call.1} parent=1 // pred_check_branch
      %43 = sbr.rel (0) target = $region21
    $region20: #{tpu_custom_call.1} parent=1 // pred_region
      %s45 = ssub.s32 16, 16
      %46 = vsyncadd [#allocation5], %s45
      %s48 = sshll.u32 [#allocation6], 4
      %s49 = int_to_ptr.vmem [resolvable:$true] %s48
      %51 = dma.vmem_to_hbm [thread:$0]  %s49, 16, %s1, [#allocation5]
    $region21: #{tpu_custom_call.1} parent=1 // pred_fallthru
      _
    // Predicated region
    $region22: #{tpu_custom_call.1} parent=1 // pred_check
      _
    $region23: #{tpu_custom_call.1} parent=1 // pred_check_branch
      %53 = sbr.rel (0) target = $region25
    $region24: #{tpu_custom_call.1} parent=1 // pred_region
      %54 = dma.done [#allocation5], 16
    $region25: #{tpu_custom_call.1} parent=1 // pred_fallthru
      _
    %55 = vsyncpa [#allocation4], 1
    %56 = vsyncpa [#allocation5], 1

</llo_original>
